<compile_context>
chip_gen: v7x
topology: tpu7x:2x2x1
jax: 0.10.0
libtpu: 0.0.40
codegen_flags: <defaults>
</compile_context>

<pallas_src>
import functools

import jax
import jax.numpy as jnp
from jax.experimental import pallas as pl
from jax.experimental.pallas import tpu as pltpu


_VMEM_LIMIT_BYTES = 32 * 1024 * 1024  # scoped VMEM limit (safe for v7x's 64 MiB physical)


# ---------------------------------------------------------------------------
# Stage 1: hoisted projections  x @ (0.5*W), x @ (0.5*W2)   (or x @ W for KP)
# ---------------------------------------------------------------------------

def _project_pair_kernel(x_ref, w_ref, w2_ref, o1_ref, o2_ref):
    x = x_ref[...].astype(jnp.float32)
    o1_ref[...] = (0.5 * jnp.dot(x, w_ref[...].astype(jnp.float32),
                                 preferred_element_type=jnp.float32)
                   ).astype(o1_ref.dtype)
    o2_ref[...] = (0.5 * jnp.dot(x, w2_ref[...].astype(jnp.float32),
                                 preferred_element_type=jnp.float32)
                   ).astype(o2_ref.dtype)


def _project_single_kernel(x_ref, w_ref, o_ref):
    o_ref[...] = jnp.dot(x_ref[...].astype(jnp.float32),
                         w_ref[...].astype(jnp.float32),
                         preferred_element_type=jnp.float32).astype(o_ref.dtype)


def _project(x, W, W2=None, *, out_dtype=jnp.float32):
    """x @ W (KP) or the pair (x @ 0.5W, x @ 0.5W2) (SKP / softmax_SKP)."""
    n, d = x.shape
    vmem = pl.BlockSpec(memory_space=pltpu.MemorySpace.VMEM)
    # TODO(synk): for very large n*d this O(n*d^2) projection could itself be row-tiled;
    # it is tiny next to the O(n^2*d) streaming stage, so one VMEM block suffices here.
    if W2 is None:
        return pl.pallas_call(
            _project_single_kernel,
            out_shape=jax.ShapeDtypeStruct((n, d), out_dtype),
            in_specs=[vmem, vmem],
            out_specs=vmem,
        )(x, W)
    return pl.pallas_call(
        _project_pair_kernel,
        out_shape=(jax.ShapeDtypeStruct((n, d), out_dtype),
                   jax.ShapeDtypeStruct((n, d), out_dtype)),
        in_specs=[vmem, vmem, vmem],
        out_specs=(vmem, vmem),
    )(x, W, W2)


# ---------------------------------------------------------------------------
# Stage 2: row-tiled main kernel over the [n, n] operands.
# ---------------------------------------------------------------------------

def _skp_row_kernel(a1_ref, a2_ref, mask_ref, xw1_ref, xw2_ref, o_ref,
                    *, softmax, mxu_dtype):
    # a*_ref / mask_ref: [TM, n] streamed row tiles; xw*_ref: resident [n, d] in
    # mxu_dtype; o_ref: [TM, d] (lane-dense when d % 128 == 0).
    mask = mask_ref[...].astype(jnp.float32)
    a1 = a1_ref[...].astype(jnp.float32) * mask
    a2 = a2_ref[...].astype(jnp.float32) * mask

    if softmax:
        # Numerically-stable UNnormalized softmax; normalization deferred past the
        # matmul as a cheap [TM, d] row scale (the divide is on a tiny [TM, 1]).
        e1 = jnp.exp(a1 - jnp.max(a1, axis=-1, keepdims=True))
        e2 = jnp.exp(a2 - jnp.max(a2, axis=-1, keepdims=True))
        inv1 = 1.0 / jnp.sum(e1, axis=-1, keepdims=True)
        inv2 = 1.0 / jnp.sum(e2, axis=-1, keepdims=True)
        a1, a2 = e1, e2

    # One [TM, n] x [n, d] MXU matmul per branch (projection already hoisted);
    # resident operands are already in mxu_dtype, accumulation always f32.
    y1 = jnp.dot(a1.astype(mxu_dtype), xw1_ref[...],
                 preferred_element_type=jnp.float32)
    y2 = jnp.dot(a2.astype(mxu_dtype), xw2_ref[...],
                 preferred_element_type=jnp.float32)

    y = (y1 * inv1 + y2 * inv2) if softmax else (y1 + y2)
    o_ref[...] = y.astype(o_ref.dtype)


def _kp_row_kernel(a1_ref, mask_ref, xw_ref, o_ref, *, mxu_dtype):
    a1 = a1_ref[...].astype(jnp.float32) * mask_ref[...].astype(jnp.float32)
    o_ref[...] = jnp.dot(a1.astype(mxu_dtype), xw_ref[...],
                         preferred_element_type=jnp.float32).astype(o_ref.dtype)


# ---------------------------------------------------------------------------
# Wrapper
# ---------------------------------------------------------------------------

def _choose_row_tile(n, num_streamed, row_tile=None,
                     budget_bytes=12 << 20, max_tile=512):
    """Biggest row tile whose double-buffered streamed tiles stay in VMEM budget."""
    if row_tile is not None:
        tm = min(int(row_tile), n)
    else:
        per_row = num_streamed * n * 4 * 2          # f32 streamed, double-buffered
        tm = min(max_tile, n, budget_bytes // max(per_row, 1))
    if tm >= n:
        return n                                    # full dim: always a legal block
    return max(8, (int(tm) // 8) * 8)               # (8, 128) sublane rule on row dim


def conv_layer_forward(x, mask, A1, A2, W, W2, *, conv="softmax_SKP",
                       row_tile=None, mxu_dtype=jnp.float32):
    """Pallas ConvLayer.forward.  x: [n, d]; mask/A1/A2: [n, n]; W/W2: [d, d]."""
    if conv not in ("softmax_SKP", "SKP", "KP"):
        raise ValueError("Error!")                  # mirrors the PyTorch else-branch
    n, d = x.shape
    out_dtype = x.dtype

    num_streamed = 2 if conv == "KP" else 3
    tm = _choose_row_tile(n, num_streamed, row_tile)
    grid = (pl.cdiv(n, tm),)                        # partial last block clamped by Pallas

    a_spec = pl.BlockSpec((tm, n), lambda i: (i, 0))   # streamed, auto double-buffered
    xw_spec = pl.BlockSpec((n, d), lambda i: (0, 0))   # VMEM-resident across all tiles
    out_spec = pl.BlockSpec((tm, d), lambda i: (i, 0))  # lane-dense when d % 128 == 0
    compiler_params = pltpu.CompilerParams(
        dimension_semantics=("parallel",),             # independent row tiles (v7x 2xTC)
        vmem_limit_bytes=_VMEM_LIMIT_BYTES,
    )

    if conv == "KP":
        xw = _project(x, W, out_dtype=mxu_dtype)       # [n, d]; A2 / W2 never touched
        kernel = functools.partial(_kp_row_kernel, mxu_dtype=mxu_dtype)
        return pl.pallas_call(
            kernel,
            out_shape=jax.ShapeDtypeStruct((n, d), out_dtype),
            grid=grid,
            in_specs=[a_spec, a_spec, xw_spec],
            out_specs=out_spec,
            compiler_params=compiler_params,
        )(A1, mask, xw)

    xw1, xw2 = _project(x, W, W2, out_dtype=mxu_dtype)  # x@0.5W, x@0.5W2 in mxu_dtype
    kernel = functools.partial(_skp_row_kernel,
                               softmax=(conv == "softmax_SKP"),
                               mxu_dtype=mxu_dtype)
    return pl.pallas_call(
        kernel,
        out_shape=jax.ShapeDtypeStruct((n, d), out_dtype),
        grid=grid,
        in_specs=[a_spec, a_spec, a_spec, xw_spec, xw_spec],
        out_specs=out_spec,
        compiler_params=compiler_params,
    )(A1, A2, mask, xw1, xw2)


def conv_layer_reference(x, mask, A1, A2, W, W2, *, conv="softmax_SKP"):
    """Plain-JAX reference matching the PyTorch forward."""
    a1 = A1 * mask
    if conv == "softmax_SKP":
        a2 = A2 * mask
        a1, a2 = jax.nn.softmax(a1, axis=-1), jax.nn.softmax(a2, axis=-1)
        return 0.5 * (a1 @ x @ W) + 0.5 * (a2 @ x @ W2)
    elif conv == "KP":
        return a1 @ x @ W
    elif conv == "SKP":
        a2 = A2 * mask
        return 0.5 * (a1 @ x @ W) + 0.5 * (a2 @ x @ W2)
    else:
        raise ValueError("Error!")


if __name__ == "__main__":
    key = jax.random.PRNGKey(0)
    key_a, key_b = jax.random.split(key)

    def make_inputs(k, n, d, degrees=1.0):
        ks = jax.random.split(k, 6)
        A1 = jax.random.normal(ks[0], (n, n), jnp.float32) * 0.05 + degrees
        A2 = jax.random.normal(ks[1], (n, n), jnp.float32) * 0.05 + degrees
        W = jax.random.normal(ks[2], (d, d), jnp.float32) * 0.05 + 1.0 / d
        W2 = jax.random.normal(ks[3], (d, d), jnp.float32) * 0.05 + 1.0 / d
        x = jax.random.normal(ks[4], (n, d), jnp.float32)
        mask = (jax.random.uniform(ks[5], (n, n)) > 0.5).astype(jnp.float32)
        return x, mask, A1, A2, W, W2

    # Case 1: softmax_SKP, lane-dense d=128, 3 row tiles (grid + pipelining exercised).
    n, d = 384, 128
    x, mask, A1, A2, W, W2 = make_inputs(key_a, n, d)
    ref = conv_layer_reference(x, mask, A1, A2, W, W2, conv="softmax_SKP")

    out = jax.block_until_ready(conv_layer_forward(
        x, mask, A1, A2, W, W2, conv="softmax_SKP", row_tile=128))
    assert out.shape == (n, d)
    assert jnp.allclose(out, ref, atol=1e-3, rtol=1e-3), "softmax_SKP f32 mismatch"

    # bf16 MXU operands (v6e/v7x fast path), f32 accumulation — relaxed tolerance.
    out_bf16 = jax.block_until_ready(conv_layer_forward(
        x, mask, A1, A2, W, W2, conv="softmax_SKP", row_tile=128,
        mxu_dtype=jnp.bfloat16))
    assert out_bf16.shape == (n, d)
    assert jnp.allclose(out_bf16, ref, atol=1e-2, rtol=2e-2), "softmax_SKP bf16 mismatch"

    # Case 2: SKP and KP at n NOT a multiple of the row tile — exercises the clamped
    # partial last block (no host-side padding / slicing anywhere).
    n2, d2 = 200, 64
    x2, mask2, B1, B2, V, V2 = make_inputs(key_b, n2, d2)
    for mode in ("SKP", "KP"):
        ref2 = conv_layer_reference(x2, mask2, B1, B2, V, V2, conv=mode)
        out2 = jax.block_until_ready(conv_layer_forward(
            x2, mask2, B1, B2, V, V2, conv=mode, row_tile=64))
        assert out2.shape == (n2, d2)
        assert jnp.allclose(out2, ref2, atol=2e-3, rtol=2e-3), f"{mode} mismatch"

    print("KERNEL_OK")
</pallas_src>

<mosaic_0001>
module attributes {stable_mosaic.version = 11 : i64} {
  func.func @_project_pair_kernel(%arg0: memref<384x128xf32, #tpu.memory_space<vmem>>, %arg1: memref<128x128xf32, #tpu.memory_space<vmem>>, %arg2: memref<128x128xf32, #tpu.memory_space<vmem>>, %arg3: memref<384x128xf32, #tpu.memory_space<vmem>>, %arg4: memref<384x128xf32, #tpu.memory_space<vmem>>) attributes {dimension_semantics = [], scalar_prefetch = 0 : i64, scratch_operands = 0 : i64, tpu.core_type = #tpu.core_type<tc>} {
    %c0 = arith.constant 0 : index
    %c0_0 = arith.constant 0 : index
    %0 = vector.load %arg0[%c0, %c0_0] : memref<384x128xf32, #tpu.memory_space<vmem>>, vector<384x128xf32>
    %c0_1 = arith.constant 0 : index
    %c0_2 = arith.constant 0 : index
    %1 = vector.load %arg1[%c0_1, %c0_2] : memref<128x128xf32, #tpu.memory_space<vmem>>, vector<128x128xf32>
    %cst = arith.constant dense<0.000000e+00> : vector<384x128xf32>
    %2 = tpu.matmul %0, %1, %cst {dimension_numbers = #tpu.dot_dimension_numbers<[1], [0], [0], [1], [0, 0, 1, 1], [], []>} : vector<384x128xf32>, vector<128x128xf32>, vector<384x128xf32> -> vector<384x128xf32>
    %cst_3 = arith.constant 5.000000e-01 : f32
    %3 = vector.broadcast %cst_3 : f32 to vector<384x128xf32>
    %4 = arith.mulf %3, %2 : vector<384x128xf32>
    %c0_4 = arith.constant 0 : index
    %c0_5 = arith.constant 0 : index
    %5 = vector.load %arg3[%c0_4, %c0_5] : memref<384x128xf32, #tpu.memory_space<vmem>>, vector<384x128xf32>
    tpu.vector_store %arg3[%c0_4, %c0_5], %4 {strides = array<i32>} : memref<384x128xf32, #tpu.memory_space<vmem>>, vector<384x128xf32>,
    %c0_6 = arith.constant 0 : index
    %c0_7 = arith.constant 0 : index
    %6 = vector.load %arg2[%c0_6, %c0_7] : memref<128x128xf32, #tpu.memory_space<vmem>>, vector<128x128xf32>
    %cst_8 = arith.constant dense<0.000000e+00> : vector<384x128xf32>
    %7 = tpu.matmul %0, %6, %cst_8 {dimension_numbers = #tpu.dot_dimension_numbers<[1], [0], [0], [1], [0, 0, 1, 1], [], []>} : vector<384x128xf32>, vector<128x128xf32>, vector<384x128xf32> -> vector<384x128xf32>
    %cst_9 = arith.constant 5.000000e-01 : f32
    %8 = vector.broadcast %cst_9 : f32 to vector<384x128xf32>
    %9 = arith.mulf %8, %7 : vector<384x128xf32>
    %c0_10 = arith.constant 0 : index
    %c0_11 = arith.constant 0 : index
    %10 = vector.load %arg4[%c0_10, %c0_11] : memref<384x128xf32, #tpu.memory_space<vmem>>, vector<384x128xf32>
    tpu.vector_store %arg4[%c0_10, %c0_11], %9 {strides = array<i32>} : memref<384x128xf32, #tpu.memory_space<vmem>>, vector<384x128xf32>,
    return
  }
}

</mosaic_0001>

<llo_original>
// kernel: tpu_custom_call.1
$region0: #{tpu_custom_call.1}
  #allocation0 [shape = 'u32[]', space=smem, size = 0x4, offset = 0x4, fixed_abs, tag = 'smem constant byte address 0x4 - core index']
  #allocation1 [shape = 'u32[144,128]{1,0:T(1,128)}', space=vmem, size = 0x12000, scoped, tag = 'internal scratch']
  %s0 = inlined_call_operand.hbm [shape: f32[384,128], index: 0, kind: input, shape index: {}]
  %s1 = inlined_call_operand.hbm [shape: f32[128,128], index: 1, kind: input, shape index: {}]
  %s2 = inlined_call_operand.hbm [shape: f32[128,128], index: 2, kind: input, shape index: {}]
  %s3 = inlined_call_operand.hbm [shape: f32[384,128], index: 3, kind: output, shape index: {0}]
  %s4 = inlined_call_operand.hbm [shape: f32[384,128], index: 4, kind: output, shape index: {1}]
  %5 = xla_tuple %s3, %s4
  %s6 = sld [smem:[#allocation0]]
  $region42: #{tpu_custom_call.1} parent=0
    _
  %s8 = ssub.s32 1, %s6
  %s9 = scalar_select 0, %s8, %s6
  $region1: #{tpu_custom_call.1} parent=0
    #allocation2 [shape = 'u8[196608]{0}', space=vmem, size = 0x30000, scoped, tag = 'input window, operand 0, single buffered']
    #allocation3 [shape = 's32[1]{0}', space=sflag, size = 0x4, scoped, tag = 'scoped memory for tpu_custom_call.1']
    #allocation4 [shape = 's32[1]{0}', space=sflag, size = 0x4, scoped, tag = 'scoped memory for tpu_custom_call.1']
    #allocation5 [shape = 'u8[65536]{0}', space=vmem, size = 0x10000, scoped, tag = 'input window, operand 1, single buffered']
    #allocation6 [shape = 's32[1]{0}', space=sflag, size = 0x4, scoped, tag = 'scoped memory for tpu_custom_call.1']
    #allocation7 [shape = 'u8[65536]{0}', space=vmem, size = 0x10000, scoped, tag = 'input window, operand 2, single buffered']
    #allocation8 [shape = 'u8[196608]{0}', space=vmem, size = 0x30000, scoped, tag = 'output window, operand 0, single buffered']
    #allocation9 [shape = 'u8[196608]{0}', space=vmem, size = 0x30000, scoped, tag = 'output window, operand 1, single buffered']
    #allocation10 [shape = 's32[1]{0}', space=sflag, size = 0x4, scoped, tag = 'scoped memory for tpu_custom_call.1']
    %10 = vsyncpa [#allocation3], 0
    %11 = vsyncpa [#allocation6], 0
    %12 = vsyncpa [#allocation4], 0
    %13 = vsyncpa [#allocation10], 0
    // Predicated region
    $region2: #{tpu_custom_call.1} parent=1 // pred_check
      _
    $region3: #{tpu_custom_call.1} parent=1 // pred_check_branch
      %15 = sbr.rel (0) target = $region5
    $region4: #{tpu_custom_call.1} parent=1 // pred_region
      %s17 = ssub.s32 6144, 6144
      %18 = vsyncadd [#allocation3], %s17
      %s19 = sshll.u32 [#allocation2], 4
      %s20 = int_to_ptr.vmem [resolvable:$true] %s19
      %25 = dma.hbm_to_vmem [thread:$0]  %s0, 6144, %s20, [#allocation3], 128, 128, 8
    $region5: #{tpu_custom_call.1} parent=1 // pred_fallthru
      _
    // Predicated region
    $region6: #{tpu_custom_call.1} parent=1 // pred_check
      _
    $region7: #{tpu_custom_call.1} parent=1 // pred_check_branch
      %27 = sbr.rel (0) target = $region9
    $region8: #{tpu_custom_call.1} parent=1 // pred_region
      %s29 = ssub.s32 2048, 2048
      %30 = vsyncadd [#allocation6], %s29
      %s31 = sshll.u32 [#allocation5], 4
      %s32 = int_to_ptr.vmem [resolvable:$true] %s31
      %37 = dma.hbm_to_vmem [thread:$0]  %s1, 2048, %s32, [#allocation6], 128, 128, 8
    $region9: #{tpu_custom_call.1} parent=1 // pred_fallthru
      _
    // Predicated region
    $region10: #{tpu_custom_call.1} parent=1 // pred_check
      _
    $region11: #{tpu_custom_call.1} parent=1 // pred_check_branch
      %39 = sbr.rel (0) target = $region13
    $region12: #{tpu_custom_call.1} parent=1 // pred_region
      %s41 = ssub.s32 2048, 2048
      %42 = vsyncadd [#allocation6], %s41
      %s43 = sshll.u32 [#allocation7], 4
      %s44 = int_to_ptr.vmem [resolvable:$true] %s43
      %49 = dma.hbm_to_vmem [thread:$0]  %s2, 2048, %s44, [#allocation6], 128, 128, 8
    $region13: #{tpu_custom_call.1} parent=1 // pred_fallthru
      _
    // Predicated region
    $region14: #{tpu_custom_call.1} parent=1 // pred_check
      _
    $region15: #{tpu_custom_call.1} parent=1 // pred_check_branch
      %51 = sbr.rel (0) target = $region17
    $region16: #{tpu_custom_call.1} parent=1 // pred_region
      %52 = dma.done [#allocation3], 6144
    $region17: #{tpu_custom_call.1} parent=1 // pred_fallthru
      _
    // Predicated region
    $region18: #{tpu_custom_call.1} parent=1 // pred_check
      _
    $region19: #{tpu_custom_call.1} parent=1 // pred_check_branch
      %54 = sbr.rel (0) target = $region21
    $region20: #{tpu_custom_call.1} parent=1 // pred_region
      %55 = dma.done [#allocation6], 2048
    $region21: #{tpu_custom_call.1} parent=1 // pred_fallthru
      _
    // Predicated region
    $region22: #{tpu_custom_call.1} parent=1 // pred_check
      _
    $region23: #{tpu_custom_call.1} parent=1 // pred_check_branch
      %57 = sbr.rel (0) target = $region25
    $region24: #{tpu_custom_call.1} parent=1 // pred_region
      %58 = dma.done [#allocation6], 2048
    $region25: #{tpu_custom_call.1} parent=1 // pred_fallthru
      _
    %v59 = vld [vmem:[#allocation2] sm:$0xff]
    %v60 = vld [vmem:[#allocation2 + $0x8] sm:$0xff]
    %v61 = vld [vmem:[#allocation2 + $0x10] sm:$0xff]
    %v62 = vld [vmem:[#allocation2 + $0x18] sm:$0xff]
    %v63 = vld [vmem:[#allocation2 + $0x20] sm:$0xff]
    %v64 = vld [vmem:[#allocation2 + $0x28] sm:$0xff]
    %v65 = vld [vmem:[#allocation2 + $0x30] sm:$0xff]
    %v66 = vld [vmem:[#allocation2 + $0x38] sm:$0xff]
    %v67 = vld [vmem:[#allocation2 + $0x40] sm:$0xff]
    %v68 = vld [vmem:[#allocation2 + $0x48] sm:$0xff]
    %v69 = vld [vmem:[#allocation2 + $0x50] sm:$0xff]
    %v70 = vld [vmem:[#allocation2 + $0x58] sm:$0xff]
    %v71 = vld [vmem:[#allocation2 + $0x60] sm:$0xff]
    %v72 = vld [vmem:[#allocation2 + $0x68] sm:$0xff]
    %v73 = vld [vmem:[#allocation2 + $0x70] sm:$0xff]
    %v74 = vld [vmem:[#allocation2 + $0x78] sm:$0xff]
    %v75 = vld [vmem:[#allocation2 + $0x80] sm:$0xff]
    %v76 = vld [vmem:[#allocation2 + $0x88] sm:$0xff]
    %v77 = vld [vmem:[#allocation2 + $0x90] sm:$0xff]
    %v78 = vld [vmem:[#allocation2 + $0x98] sm:$0xff]
    %v79 = vld [vmem:[#allocation2 + $0xa0] sm:$0xff]
    %v80 = vld [vmem:[#allocation2 + $0xa8] sm:$0xff]
    %v81 = vld [vmem:[#allocation2 + $0xb0] sm:$0xff]
    %v82 = vld [vmem:[#allocation2 + $0xb8] sm:$0xff]
    %v83 = vld [vmem:[#allocation2 + $0xc0] sm:$0xff]
    %v84 = vld [vmem:[#allocation2 + $0xc8] sm:$0xff]
    %v85 = vld [vmem:[#allocation2 + $0xd0] sm:$0xff]
    %v86 = vld [vmem:[#allocation2 + $0xd8] sm:$0xff]
    %v87 = vld [vmem:[#allocation2 + $0xe0] sm:$0xff]
    %v88 = vld [vmem:[#allocation2 + $0xe8] sm:$0xff]
    %v89 = vld [vmem:[#allocation2 + $0xf0] sm:$0xff]
    %v90 = vld [vmem:[#allocation2 + $0xf8] sm:$0xff]
    %v91 = vld [vmem:[#allocation2 + $0x100] sm:$0xff]
    %v92 = vld [vmem:[#allocation2 + $0x108] sm:$0xff]
    %v93 = vld [vmem:[#allocation2 + $0x110] sm:$0xff]
    %v94 = vld [vmem:[#allocation2 + $0x118] sm:$0xff]
    %v95 = vld [vmem:[#allocation2 + $0x120] sm:$0xff]
    %v96 = vld [vmem:[#allocation2 + $0x128] sm:$0xff]
    %v97 = vld [vmem:[#allocation2 + $0x130] sm:$0xff]
    %v98 = vld [vmem:[#allocation2 + $0x138] sm:$0xff]
    %v99 = vld [vmem:[#allocation2 + $0x140] sm:$0xff]
    %v100 = vld [vmem:[#allocation2 + $0x148] sm:$0xff]
    %v101 = vld [vmem:[#allocation2 + $0x150] sm:$0xff]
    %v102 = vld [vmem:[#allocation2 + $0x158] sm:$0xff]
    %v103 = vld [vmem:[#allocation2 + $0x160] sm:$0xff]
    %v104 = vld [vmem:[#allocation2 + $0x168] sm:$0xff]
    %v105 = vld [vmem:[#allocation2 + $0x170] sm:$0xff]
    %v106 = vld [vmem:[#allocation2 + $0x178] sm:$0xff]
    %v107 = vld [vmem:[#allocation5] sm:$0xff]
    %v108 = vld [vmem:[#allocation5 + $0x8] sm:$0xff]
    %v109 = vld [vmem:[#allocation5 + $0x10] sm:$0xff]
    %v110 = vld [vmem:[#allocation5 + $0x18] sm:$0xff]
    %v111 = vld [vmem:[#allocation5 + $0x20] sm:$0xff]
    %v112 = vld [vmem:[#allocation5 + $0x28] sm:$0xff]
    %v113 = vld [vmem:[#allocation5 + $0x30] sm:$0xff]
    %v114 = vld [vmem:[#allocation5 + $0x38] sm:$0xff]
    %v115 = vld [vmem:[#allocation5 + $0x40] sm:$0xff]
    %v116 = vld [vmem:[#allocation5 + $0x48] sm:$0xff]
    %v117 = vld [vmem:[#allocation5 + $0x50] sm:$0xff]
    %v118 = vld [vmem:[#allocation5 + $0x58] sm:$0xff]
    %v119 = vld [vmem:[#allocation5 + $0x60] sm:$0xff]
    %v120 = vld [vmem:[#allocation5 + $0x68] sm:$0xff]
    %v121 = vld [vmem:[#allocation5 + $0x70] sm:$0xff]
    %v122 = vld [vmem:[#allocation5 + $0x78] sm:$0xff]
    %123 = vmatprep.subr.mxu0 0.0
    %124 = vmatpush1.msra.mxu0 %v107
    %125 = vmatprep.subr.mxu0 0.0
    %126 = vmatpush1.msra.mxu0 %v108
    %127 = vmatprep.subr.mxu0 0.0
    %128 = vmatpush1.msra.mxu0 %v109
    %129 = vmatprep.subr.mxu0 0.0
    %130 = vmatpush1.msra.mxu0 %v110
    %131 = vmatprep.subr.mxu0 0.0
    %132 = vmatpush1.msra.mxu0 %v111
    %133 = vmatprep.subr.mxu0 0.0
    %134 = vmatpush1.msra.mxu0 %v112
    %135 = vmatprep.subr.mxu0 0.0
    %136 = vmatpush1.msra.mxu0 %v113
    %137 = vmatprep.subr.mxu0 0.0
    %138 = vmatpush1.msra.mxu0 %v114
    %139 = vmatprep.subr.mxu0 0.0
    %140 = vmatpush1.msra.mxu0 %v115
    %141 = vmatprep.subr.mxu0 0.0
    %142 = vmatpush1.msra.mxu0 %v116
    %143 = vmatprep.subr.mxu0 0.0
    %144 = vmatpush1.msra.mxu0 %v117
    %145 = vmatprep.subr.mxu0 0.0
    %146 = vmatpush1.msra.mxu0 %v118
    %147 = vmatprep.subr.mxu0 0.0
    %148 = vmatpush1.msra.mxu0 %v119
    %149 = vmatprep.subr.mxu0 0.0
    %150 = vmatpush1.msra.mxu0 %v120
    %151 = vmatprep.subr.mxu0 0.0
    %152 = vmatpush1.msra.mxu0 %v121
    %153 = vmatprep.subr.mxu0 0.0
    %154 = vmatpush1.msra.mxu0 %v122
    %155 = vmatprep.subr.mxu0 0.0
    %156 = vmatpush1.msra.mxu0 0.0
    %157 = vmatprep.subr.mxu0 0.0
    %158 = vmatpush1.msra.mxu0 0.0
    %159 = vmatprep.subr.mxu0 0.0
    %160 = vmatpush1.msra.mxu0 0.0
    %161 = vmatprep.subr.mxu0 0.0
    %162 = vmatpush1.msra.mxu0 0.0
    %163 = vmatprep.subr.mxu0 0.0
    %164 = vmatpush1.msra.mxu0 0.0
    %165 = vmatprep.subr.mxu0 0.0
    %166 = vmatpush1.msra.mxu0 0.0
    %167 = vmatprep.subr.mxu0 0.0
    %168 = vmatpush1.msra.mxu0 0.0
    %169 = vmatprep.subr.mxu0 0.0
    %170 = vmatpush1.msra.mxu0 0.0
    %171 = vmatprep.subr.mxu0 0.0
    %172 = vmatpush1.msra.mxu0 0.0
    %173 = vmatprep.subr.mxu0 0.0
    %174 = vmatpush1.msra.mxu0 0.0
    %175 = vmatprep.subr.mxu0 0.0
    %176 = vmatpush1.msra.mxu0 0.0
    %177 = vmatprep.subr.mxu0 0.0
    %178 = vmatpush1.msra.mxu0 0.0
    %179 = vmatprep.subr.mxu0 0.0
    %180 = vmatpush1.msra.mxu0 0.0
    %181 = vmatprep.subr.mxu0 0.0
    %182 = vmatpush1.msra.mxu0 0.0
    %183 = vmatprep.subr.mxu0 0.0
    %184 = vmatpush1.msra.mxu0 0.0
    %185 = vmatprep.subr.mxu0 0.0
    %186 = vmatpush1.msra.mxu0 0.0
    %187 = vmatprep.mubr.f32.mxu0 0.0
    %188 = vmatmul.mubr.f32.gmra.mrb[0].mxu0 %v59
    %v189 = vpop.f32.mrb[0].mxu0
    %v190 = vadd.f32 0.0, %v189
    %v191 = vpop.f32.mrb[0].mxu0
    %192 = vmatprep.mubr.f32.mxu0 0.0
    %193 = vmatmul.mubr.f32.gmra.mrb[0].mxu0 %v60
    %v194 = vpop.f32.mrb[0].mxu0
    %v195 = vadd.f32 0.0, %v194
    %v196 = vpop.f32.mrb[0].mxu0
    %197 = vmatprep.mubr.f32.mxu0 0.0
    %198 = vmatmul.mubr.f32.gmra.mrb[0].mxu0 %v61
    %v199 = vpop.f32.mrb[0].mxu0
    %v200 = vadd.f32 0.0, %v199
    %v201 = vpop.f32.mrb[0].mxu0
    %202 = vmatprep.mubr.f32.mxu0 0.0
    %203 = vmatmul.mubr.f32.gmra.mrb[0].mxu0 %v62
    %v204 = vpop.f32.mrb[0].mxu0
    %v205 = vadd.f32 0.0, %v204
    %v206 = vpop.f32.mrb[0].mxu0
    %207 = vmatprep.mubr.f32.mxu0 0.0
    %208 = vmatmul.mubr.f32.gmra.mrb[0].mxu0 %v63
    %v209 = vpop.f32.mrb[0].mxu0
    %v210 = vadd.f32 0.0, %v209
    %v211 = vpop.f32.mrb[0].mxu0
    %212 = vmatprep.mubr.f32.mxu0 0.0
    %213 = vmatmul.mubr.f32.gmra.mrb[0].mxu0 %v64
    %v214 = vpop.f32.mrb[0].mxu0
    %v215 = vadd.f32 0.0, %v214
    %v216 = vpop.f32.mrb[0].mxu0
    %217 = vmatprep.mubr.f32.mxu0 0.0
    %218 = vmatmul.mubr.f32.gmra.mrb[0].mxu0 %v65
    %v219 = vpop.f32.mrb[0].mxu0
    %v220 = vadd.f32 0.0, %v219
    %v221 = vpop.f32.mrb[0].mxu0
    %222 = vmatprep.mubr.f32.mxu0 0.0
    %223 = vmatmul.mubr.f32.gmra.mrb[0].mxu0 %v66
    %v224 = vpop.f32.mrb[0].mxu0
    %v225 = vadd.f32 0.0, %v224
    %v226 = vpop.f32.mrb[0].mxu0
    %227 = vmatprep.mubr.f32.mxu0 0.0
    %228 = vmatmul.mubr.f32.gmra.mrb[0].mxu0 %v67
    %v229 = vpop.f32.mrb[0].mxu0
    %v230 = vadd.f32 0.0, %v229
    %v231 = vpop.f32.mrb[0].mxu0
    %232 = vmatprep.mubr.f32.mxu0 0.0
    %233 = vmatmul.mubr.f32.gmra.mrb[0].mxu0 %v68
    %v234 = vpop.f32.mrb[0].mxu0
    %v235 = vadd.f32 0.0, %v234
    %v236 = vpop.f32.mrb[0].mxu0
    %237 = vmatprep.mubr.f32.mxu0 0.0
    %238 = vmatmul.mubr.f32.gmra.mrb[0].mxu0 %v69
    %v239 = vpop.f32.mrb[0].mxu0
    %v240 = vadd.f32 0.0, %v239
    %v241 = vpop.f32.mrb[0].mxu0
    %242 = vmatprep.mubr.f32.mxu0 0.0
    %243 = vmatmul.mubr.f32.gmra.mrb[0].mxu0 %v70
    %v244 = vpop.f32.mrb[0].mxu0
    %v245 = vadd.f32 0.0, %v244
    %v246 = vpop.f32.mrb[0].mxu0
    %247 = vmatprep.mubr.f32.mxu0 0.0
    %248 = vmatmul.mubr.f32.gmra.mrb[0].mxu0 %v71
    %v249 = vpop.f32.mrb[0].mxu0
    %v250 = vadd.f32 0.0, %v249
    %v251 = vpop.f32.mrb[0].mxu0
    %252 = vmatprep.mubr.f32.mxu0 0.0
    %253 = vmatmul.mubr.f32.gmra.mrb[0].mxu0 %v72
    %v254 = vpop.f32.mrb[0].mxu0
    %v255 = vadd.f32 0.0, %v254
    %v256 = vpop.f32.mrb[0].mxu0
    %257 = vmatprep.mubr.f32.mxu0 0.0
    %258 = vmatmul.mubr.f32.gmra.mrb[0].mxu0 %v73
    %v259 = vpop.f32.mrb[0].mxu0
    %v260 = vadd.f32 0.0, %v259
    %v261 = vpop.f32.mrb[0].mxu0
    %262 = vmatprep.mubr.f32.mxu0 0.0
    %263 = vmatmul.mubr.f32.gmra.mrb[0].mxu0 %v74
    %v264 = vpop.f32.mrb[0].mxu0
    %v265 = vadd.f32 0.0, %v264
    %v266 = vpop.f32.mrb[0].mxu0
    %267 = vmatprep.mubr.f32.mxu0 0.0
    %268 = vmatmul.mubr.f32.gmra.mrb[0].mxu0 %v75
    %v269 = vpop.f32.mrb[0].mxu0
    %v270 = vadd.f32 0.0, %v269
    %v271 = vpop.f32.mrb[0].mxu0
    %272 = vmatprep.mubr.f32.mxu0 0.0
    %273 = vmatmul.mubr.f32.gmra.mrb[0].mxu0 %v76
    %v274 = vpop.f32.mrb[0].mxu0
    %v275 = vadd.f32 0.0, %v274
    %v276 = vpop.f32.mrb[0].mxu0
    %277 = vmatprep.mubr.f32.mxu0 0.0
    %278 = vmatmul.mubr.f32.gmra.mrb[0].mxu0 %v77
    %v279 = vpop.f32.mrb[0].mxu0
    %v280 = vadd.f32 0.0, %v279
    %v281 = vpop.f32.mrb[0].mxu0
    %282 = vmatprep.mubr.f32.mxu0 0.0
    %283 = vmatmul.mubr.f32.gmra.mrb[0].mxu0 %v78
    %v284 = vpop.f32.mrb[0].mxu0
    %v285 = vadd.f32 0.0, %v284
    %v286 = vpop.f32.mrb[0].mxu0
    %287 = vmatprep.mubr.f32.mxu0 0.0
    %288 = vmatmul.mubr.f32.gmra.mrb[0].mxu0 %v79
    %v289 = vpop.f32.mrb[0].mxu0
    %v290 = vadd.f32 0.0, %v289
    %v291 = vpop.f32.mrb[0].mxu0
    %292 = vmatprep.mubr.f32.mxu0 0.0
    %293 = vmatmul.mubr.f32.gmra.mrb[0].mxu0 %v80
    %v294 = vpop.f32.mrb[0].mxu0
    %v295 = vadd.f32 0.0, %v294
    %v296 = vpop.f32.mrb[0].mxu0
    %297 = vmatprep.mubr.f32.mxu0 0.0
    %298 = vmatmul.mubr.f32.gmra.mrb[0].mxu0 %v81
    %v299 = vpop.f32.mrb[0].mxu0
    %v300 = vadd.f32 0.0, %v299
    %v301 = vpop.f32.mrb[0].mxu0
    %302 = vmatprep.mubr.f32.mxu0 0.0
    %303 = vmatmul.mubr.f32.gmra.mrb[0].mxu0 %v82
    %v304 = vpop.f32.mrb[0].mxu0
    %v305 = vadd.f32 0.0, %v304
    %v306 = vpop.f32.mrb[0].mxu0
    %307 = vmatprep.mubr.f32.mxu0 0.0
    %308 = vmatmul.mubr.f32.gmra.mrb[0].mxu0 %v83
    %v309 = vpop.f32.mrb[0].mxu0
    %v310 = vadd.f32 0.0, %v309
    %v311 = vpop.f32.mrb[0].mxu0
    %312 = vmatprep.mubr.f32.mxu0 0.0
    %313 = vmatmul.mubr.f32.gmra.mrb[0].mxu0 %v84
    %v314 = vpop.f32.mrb[0].mxu0
    %v315 = vadd.f32 0.0, %v314
    %v316 = vpop.f32.mrb[0].mxu0
    %317 = vmatprep.mubr.f32.mxu0 0.0
    %318 = vmatmul.mubr.f32.gmra.mrb[0].mxu0 %v85
    %v319 = vpop.f32.mrb[0].mxu0
    %v320 = vadd.f32 0.0, %v319
    %v321 = vpop.f32.mrb[0].mxu0
    %322 = vmatprep.mubr.f32.mxu0 0.0
    %323 = vmatmul.mubr.f32.gmra.mrb[0].mxu0 %v86
    %v324 = vpop.f32.mrb[0].mxu0
    %v325 = vadd.f32 0.0, %v324
    %v326 = vpop.f32.mrb[0].mxu0
    %327 = vmatprep.mubr.f32.mxu0 0.0
    %328 = vmatmul.mubr.f32.gmra.mrb[0].mxu0 %v87
    %v329 = vpop.f32.mrb[0].mxu0
    %v330 = vadd.f32 0.0, %v329
    %v331 = vpop.f32.mrb[0].mxu0
    %332 = vmatprep.mubr.f32.mxu0 0.0
    %333 = vmatmul.mubr.f32.gmra.mrb[0].mxu0 %v88
    %v334 = vpop.f32.mrb[0].mxu0
    %v335 = vadd.f32 0.0, %v334
    %v336 = vpop.f32.mrb[0].mxu0
    %337 = vmatprep.mubr.f32.mxu0 0.0
    %338 = vmatmul.mubr.f32.gmra.mrb[0].mxu0 %v89
    %v339 = vpop.f32.mrb[0].mxu0
    %v340 = vadd.f32 0.0, %v339
    %v341 = vpop.f32.mrb[0].mxu0
    %342 = vmatprep.mubr.f32.mxu0 0.0
    %343 = vmatmul.mubr.f32.gmra.mrb[0].mxu0 %v90
    %v344 = vpop.f32.mrb[0].mxu0
    %v345 = vadd.f32 0.0, %v344
    %v346 = vpop.f32.mrb[0].mxu0
    %347 = vmatprep.mubr.f32.mxu0 0.0
    %348 = vmatmul.mubr.f32.gmra.mrb[0].mxu0 %v91
    %v349 = vpop.f32.mrb[0].mxu0
    %v350 = vadd.f32 0.0, %v349
    %v351 = vpop.f32.mrb[0].mxu0
    %352 = vmatprep.mubr.f32.mxu0 0.0
    %353 = vmatmul.mubr.f32.gmra.mrb[0].mxu0 %v92
    %v354 = vpop.f32.mrb[0].mxu0
    %v355 = vadd.f32 0.0, %v354
    %v356 = vpop.f32.mrb[0].mxu0
    %357 = vmatprep.mubr.f32.mxu0 0.0
    %358 = vmatmul.mubr.f32.gmra.mrb[0].mxu0 %v93
    %v359 = vpop.f32.mrb[0].mxu0
    %v360 = vadd.f32 0.0, %v359
    %v361 = vpop.f32.mrb[0].mxu0
    %362 = vmatprep.mubr.f32.mxu0 0.0
    %363 = vmatmul.mubr.f32.gmra.mrb[0].mxu0 %v94
    %v364 = vpop.f32.mrb[0].mxu0
    %v365 = vadd.f32 0.0, %v364
    %v366 = vpop.f32.mrb[0].mxu0
    %367 = vmatprep.mubr.f32.mxu0 0.0
    %368 = vmatmul.mubr.f32.gmra.mrb[0].mxu0 %v95
    %v369 = vpop.f32.mrb[0].mxu0
    %v370 = vadd.f32 0.0, %v369
    %v371 = vpop.f32.mrb[0].mxu0
    %372 = vmatprep.mubr.f32.mxu0 0.0
    %373 = vmatmul.mubr.f32.gmra.mrb[0].mxu0 %v96
    %v374 = vpop.f32.mrb[0].mxu0
    %v375 = vadd.f32 0.0, %v374
    %v376 = vpop.f32.mrb[0].mxu0
    %377 = vmatprep.mubr.f32.mxu0 0.0
    %378 = vmatmul.mubr.f32.gmra.mrb[0].mxu0 %v97
    %v379 = vpop.f32.mrb[0].mxu0
    %v380 = vadd.f32 0.0, %v379
    %v381 = vpop.f32.mrb[0].mxu0
    %382 = vmatprep.mubr.f32.mxu0 0.0
    %383 = vmatmul.mubr.f32.gmra.mrb[0].mxu0 %v98
    %v384 = vpop.f32.mrb[0].mxu0
    %v385 = vadd.f32 0.0, %v384
    %v386 = vpop.f32.mrb[0].mxu0
    %387 = vmatprep.mubr.f32.mxu0 0.0
    %388 = vmatmul.mubr.f32.gmra.mrb[0].mxu0 %v99
    %v389 = vpop.f32.mrb[0].mxu0
    %v390 = vadd.f32 0.0, %v389
    %v391 = vpop.f32.mrb[0].mxu0
    %392 = vmatprep.mubr.f32.mxu0 0.0
    %393 = vmatmul.mubr.f32.gmra.mrb[0].mxu0 %v100
    %v394 = vpop.f32.mrb[0].mxu0
    %v395 = vadd.f32 0.0, %v394
    %v396 = vpop.f32.mrb[0].mxu0
    %397 = vmatprep.mubr.f32.mxu0 0.0
    %398 = vmatmul.mubr.f32.gmra.mrb[0].mxu0 %v101
    %v399 = vpop.f32.mrb[0].mxu0
    %v400 = vadd.f32 0.0, %v399
    %v401 = vpop.f32.mrb[0].mxu0
    %402 = vmatprep.mubr.f32.mxu0 0.0
    %403 = vmatmul.mubr.f32.gmra.mrb[0].mxu0 %v102
    %v404 = vpop.f32.mrb[0].mxu0
    %v405 = vadd.f32 0.0, %v404
    %v406 = vpop.f32.mrb[0].mxu0
    %407 = vmatprep.mubr.f32.mxu0 0.0
    %408 = vmatmul.mubr.f32.gmra.mrb[0].mxu0 %v103
    %v409 = vpop.f32.mrb[0].mxu0
    %v410 = vadd.f32 0.0, %v409
    %v411 = vpop.f32.mrb[0].mxu0
    %412 = vmatprep.mubr.f32.mxu0 0.0
    %413 = vmatmul.mubr.f32.gmra.mrb[0].mxu0 %v104
    %v414 = vpop.f32.mrb[0].mxu0
    %v415 = vadd.f32 0.0, %v414
    %v416 = vpop.f32.mrb[0].mxu0
    %417 = vmatprep.mubr.f32.mxu0 0.0
    %418 = vmatmul.mubr.f32.gmra.mrb[0].mxu0 %v105
    %v419 = vpop.f32.mrb[0].mxu0
    %v420 = vadd.f32 0.0, %v419
    %v421 = vpop.f32.mrb[0].mxu0
    %422 = vmatprep.mubr.f32.mxu0 0.0
    %423 = vmatmul.mubr.f32.gmra.mrb[0].mxu0 %v106
    %v424 = vpop.f32.mrb[0].mxu0
    %v425 = vadd.f32 0.0, %v424
    %v426 = vpop.f32.mrb[0].mxu0
    %427 = vdwg.mxu0
    %v428 = vmul.f32 %v190, 0.5
    %v429 = vmul.f32 %v195, 0.5
    %v430 = vmul.f32 %v200, 0.5
    %v431 = vmul.f32 %v205, 0.5
    %v432 = vmul.f32 %v210, 0.5
    %v433 = vmul.f32 %v215, 0.5
    %v434 = vmul.f32 %v220, 0.5
    %v435 = vmul.f32 %v225, 0.5
    %v436 = vmul.f32 %v230, 0.5
    %v437 = vmul.f32 %v235, 0.5
    %v438 = vmul.f32 %v240, 0.5
    %v439 = vmul.f32 %v245, 0.5
    %v440 = vmul.f32 %v250, 0.5
    %v441 = vmul.f32 %v255, 0.5
    %v442 = vmul.f32 %v260, 0.5
    %v443 = vmul.f32 %v265, 0.5
    %v444 = vmul.f32 %v270, 0.5
    %v445 = vmul.f32 %v275, 0.5
    %v446 = vmul.f32 %v280, 0.5
    %v447 = vmul.f32 %v285, 0.5
    %v448 = vmul.f32 %v290, 0.5
    %v449 = vmul.f32 %v295, 0.5
    %v450 = vmul.f32 %v300, 0.5
    %v451 = vmul.f32 %v305, 0.5
    %v452 = vmul.f32 %v310, 0.5
    %v453 = vmul.f32 %v315, 0.5
    %v454 = vmul.f32 %v320, 0.5
    %v455 = vmul.f32 %v325, 0.5
    %v456 = vmul.f32 %v330, 0.5
    %v457 = vmul.f32 %v335, 0.5
    %v458 = vmul.f32 %v340, 0.5
    %v459 = vmul.f32 %v345, 0.5
    %v460 = vmul.f32 %v350, 0.5
    %v461 = vmul.f32 %v355, 0.5
    %v462 = vmul.f32 %v360, 0.5
    %v463 = vmul.f32 %v365, 0.5
    %v464 = vmul.f32 %v370, 0.5
    %v465 = vmul.f32 %v375, 0.5
    %v466 = vmul.f32 %v380, 0.5
    %v467 = vmul.f32 %v385, 0.5
    %v468 = vmul.f32 %v390, 0.5
    %v469 = vmul.f32 %v395, 0.5
    %v470 = vmul.f32 %v400, 0.5
    %v471 = vmul.f32 %v405, 0.5
    %v472 = vmul.f32 %v410, 0.5
    %v473 = vmul.f32 %v415, 0.5
    %v474 = vmul.f32 %v420, 0.5
    %v475 = vmul.f32 %v425, 0.5
    %476 = vst [vmem:[#allocation8] sm:$0xff] %v428
    %477 = vst [vmem:[#allocation8 + $0x8] sm:$0xff] %v429
    %478 = vst [vmem:[#allocation8 + $0x10] sm:$0xff] %v430
    %479 = vst [vmem:[#allocation8 + $0x18] sm:$0xff] %v431
    %480 = vst [vmem:[#allocation8 + $0x20] sm:$0xff] %v432
    %481 = vst [vmem:[#allocation8 + $0x28] sm:$0xff] %v433
    %482 = vst [vmem:[#allocation8 + $0x30] sm:$0xff] %v434
    %483 = vst [vmem:[#allocation8 + $0x38] sm:$0xff] %v435
    %484 = vst [vmem:[#allocation8 + $0x40] sm:$0xff] %v436
    %485 = vst [vmem:[#allocation8 + $0x48] sm:$0xff] %v437
    %486 = vst [vmem:[#allocation8 + $0x50] sm:$0xff] %v438
    %487 = vst [vmem:[#allocation8 + $0x58] sm:$0xff] %v439
    %488 = vst [vmem:[#allocation8 + $0x60] sm:$0xff] %v440
    %489 = vst [vmem:[#allocation8 + $0x68] sm:$0xff] %v441
    %490 = vst [vmem:[#allocation8 + $0x70] sm:$0xff] %v442
    %491 = vst [vmem:[#allocation8 + $0x78] sm:$0xff] %v443
    %492 = vst [vmem:[#allocation8 + $0x80] sm:$0xff] %v444
    %493 = vst [vmem:[#allocation8 + $0x88] sm:$0xff] %v445
    %494 = vst [vmem:[#allocation8 + $0x90] sm:$0xff] %v446
    %495 = vst [vmem:[#allocation8 + $0x98] sm:$0xff] %v447
    %496 = vst [vmem:[#allocation8 + $0xa0] sm:$0xff] %v448
    %497 = vst [vmem:[#allocation8 + $0xa8] sm:$0xff] %v449
    %498 = vst [vmem:[#allocation8 + $0xb0] sm:$0xff] %v450
    %499 = vst [vmem:[#allocation8 + $0xb8] sm:$0xff] %v451
    %500 = vst [vmem:[#allocation8 + $0xc0] sm:$0xff] %v452
    %501 = vst [vmem:[#allocation8 + $0xc8] sm:$0xff] %v453
    %502 = vst [vmem:[#allocation8 + $0xd0] sm:$0xff] %v454
    %503 = vst [vmem:[#allocation8 + $0xd8] sm:$0xff] %v455
    %504 = vst [vmem:[#allocation8 + $0xe0] sm:$0xff] %v456
    %505 = vst [vmem:[#allocation8 + $0xe8] sm:$0xff] %v457
    %506 = vst [vmem:[#allocation8 + $0xf0] sm:$0xff] %v458
    %507 = vst [vmem:[#allocation8 + $0xf8] sm:$0xff] %v459
    %508 = vst [vmem:[#allocation8 + $0x100] sm:$0xff] %v460
    %509 = vst [vmem:[#allocation8 + $0x108] sm:$0xff] %v461
    %510 = vst [vmem:[#allocation8 + $0x110] sm:$0xff] %v462
    %511 = vst [vmem:[#allocation8 + $0x118] sm:$0xff] %v463
    %512 = vst [vmem:[#allocation8 + $0x120] sm:$0xff] %v464
    %513 = vst [vmem:[#allocation8 + $0x128] sm:$0xff] %v465
    %514 = vst [vmem:[#allocation8 + $0x130] sm:$0xff] %v466
    %515 = vst [vmem:[#allocation8 + $0x138] sm:$0xff] %v467
    %516 = vst [vmem:[#allocation8 + $0x140] sm:$0xff] %v468
    %517 = vst [vmem:[#allocation8 + $0x148] sm:$0xff] %v469
    %518 = vst [vmem:[#allocation8 + $0x150] sm:$0xff] %v470
    %519 = vst [vmem:[#allocation8 + $0x158] sm:$0xff] %v471
    %520 = vst [vmem:[#allocation8 + $0x160] sm:$0xff] %v472
    %521 = vst [vmem:[#allocation8 + $0x168] sm:$0xff] %v473
    %522 = vst [vmem:[#allocation8 + $0x170] sm:$0xff] %v474
    %523 = vst [vmem:[#allocation8 + $0x178] sm:$0xff] %v475
    %v524 = vld [vmem:[#allocation7] sm:$0xff]
    %v525 = vld [vmem:[#allocation7 + $0x8] sm:$0xff]
    %v526 = vld [vmem:[#allocation7 + $0x10] sm:$0xff]
    %v527 = vld [vmem:[#allocation7 + $0x18] sm:$0xff]
    %v528 = vld [vmem:[#allocation7 + $0x20] sm:$0xff]
    %v529 = vld [vmem:[#allocation7 + $0x28] sm:$0xff]
    %v530 = vld [vmem:[#allocation7 + $0x30] sm:$0xff]
    %v531 = vld [vmem:[#allocation7 + $0x38] sm:$0xff]
    %v532 = vld [vmem:[#allocation7 + $0x40] sm:$0xff]
    %v533 = vld [vmem:[#allocation7 + $0x48] sm:$0xff]
    %v534 = vld [vmem:[#allocation7 + $0x50] sm:$0xff]
    %v535 = vld [vmem:[#allocation7 + $0x58] sm:$0xff]
    %v536 = vld [vmem:[#allocation7 + $0x60] sm:$0xff]
    %v537 = vld [vmem:[#allocation7 + $0x68] sm:$0xff]
    %v538 = vld [vmem:[#allocation7 + $0x70] sm:$0xff]
    %v539 = vld [vmem:[#allocation7 + $0x78] sm:$0xff]
    %540 = vmatprep.subr.mxu0 0.0
    %541 = vmatpush1.msra.mxu0 %v524
    %542 = vmatprep.subr.mxu0 0.0
    %543 = vmatpush1.msra.mxu0 %v525
    %544 = vmatprep.subr.mxu0 0.0
    %545 = vmatpush1.msra.mxu0 %v526
    %546 = vmatprep.subr.mxu0 0.0
    %547 = vmatpush1.msra.mxu0 %v527
    %548 = vmatprep.subr.mxu0 0.0
    %549 = vmatpush1.msra.mxu0 %v528
    %550 = vmatprep.subr.mxu0 0.0
    %551 = vmatpush1.msra.mxu0 %v529
    %552 = vmatprep.subr.mxu0 0.0
    %553 = vmatpush1.msra.mxu0 %v530
    %554 = vmatprep.subr.mxu0 0.0
    %555 = vmatpush1.msra.mxu0 %v531
    %556 = vmatprep.subr.mxu0 0.0
    %557 = vmatpush1.msra.mxu0 %v532
    %558 = vmatprep.subr.mxu0 0.0
    %559 = vmatpush1.msra.mxu0 %v533
    %560 = vmatprep.subr.mxu0 0.0
    %561 = vmatpush1.msra.mxu0 %v534
    %562 = vmatprep.subr.mxu0 0.0
    %563 = vmatpush1.msra.mxu0 %v535
    %564 = vmatprep.subr.mxu0 0.0
    %565 = vmatpush1.msra.mxu0 %v536
    %566 = vmatprep.subr.mxu0 0.0
    %567 = vmatpush1.msra.mxu0 %v537
    %568 = vmatprep.subr.mxu0 0.0
    %569 = vmatpush1.msra.mxu0 %v538
    %570 = vmatprep.subr.mxu0 0.0
    %571 = vmatpush1.msra.mxu0 %v539
    %572 = vmatprep.subr.mxu0 0.0
    %573 = vmatpush1.msra.mxu0 0.0
    %574 = vmatprep.subr.mxu0 0.0
    %575 = vmatpush1.msra.mxu0 0.0
    %576 = vmatprep.subr.mxu0 0.0
    %577 = vmatpush1.msra.mxu0 0.0
    %578 = vmatprep.subr.mxu0 0.0
    %579 = vmatpush1.msra.mxu0 0.0
    %580 = vmatprep.subr.mxu0 0.0
    %581 = vmatpush1.msra.mxu0 0.0
    %582 = vmatprep.subr.mxu0 0.0
    %583 = vmatpush1.msra.mxu0 0.0
    %584 = vmatprep.subr.mxu0 0.0
    %585 = vmatpush1.msra.mxu0 0.0
    %586 = vmatprep.subr.mxu0 0.0
    %587 = vmatpush1.msra.mxu0 0.0
    %588 = vmatprep.subr.mxu0 0.0
    %589 = vmatpush1.msra.mxu0 0.0
    %590 = vmatprep.subr.mxu0 0.0
    %591 = vmatpush1.msra.mxu0 0.0
    %592 = vmatprep.subr.mxu0 0.0
    %593 = vmatpush1.msra.mxu0 0.0
    %594 = vmatprep.subr.mxu0 0.0
    %595 = vmatpush1.msra.mxu0 0.0
    %596 = vmatprep.subr.mxu0 0.0
    %597 = vmatpush1.msra.mxu0 0.0
    %598 = vmatprep.subr.mxu0 0.0
    %599 = vmatpush1.msra.mxu0 0.0
    %600 = vmatprep.subr.mxu0 0.0
    %601 = vmatpush1.msra.mxu0 0.0
    %602 = vmatprep.subr.mxu0 0.0
    %603 = vmatpush1.msra.mxu0 0.0
    %604 = vmatprep.mubr.f32.mxu0 0.0
    %605 = vmatmul.mubr.f32.gmra.mrb[0].mxu0 %v59
    %v606 = vpop.f32.mrb[0].mxu0
    %v607 = vadd.f32 0.0, %v606
    %v608 = vpop.f32.mrb[0].mxu0
    %609 = vmatprep.mubr.f32.mxu0 0.0
    %610 = vmatmul.mubr.f32.gmra.mrb[0].mxu0 %v60
    %v611 = vpop.f32.mrb[0].mxu0
    %v612 = vadd.f32 0.0, %v611
    %v613 = vpop.f32.mrb[0].mxu0
    %614 = vmatprep.mubr.f32.mxu0 0.0
    %615 = vmatmul.mubr.f32.gmra.mrb[0].mxu0 %v61
    %v616 = vpop.f32.mrb[0].mxu0
    %v617 = vadd.f32 0.0, %v616
    %v618 = vpop.f32.mrb[0].mxu0
    %619 = vmatprep.mubr.f32.mxu0 0.0
    %620 = vmatmul.mubr.f32.gmra.mrb[0].mxu0 %v62
    %v621 = vpop.f32.mrb[0].mxu0
    %v622 = vadd.f32 0.0, %v621
    %v623 = vpop.f32.mrb[0].mxu0
    %624 = vmatprep.mubr.f32.mxu0 0.0
    %625 = vmatmul.mubr.f32.gmra.mrb[0].mxu0 %v63
    %v626 = vpop.f32.mrb[0].mxu0
    %v627 = vadd.f32 0.0, %v626
    %v628 = vpop.f32.mrb[0].mxu0
    %629 = vmatprep.mubr.f32.mxu0 0.0
    %630 = vmatmul.mubr.f32.gmra.mrb[0].mxu0 %v64
    %v631 = vpop.f32.mrb[0].mxu0
    %v632 = vadd.f32 0.0, %v631
    %v633 = vpop.f32.mrb[0].mxu0
    %634 = vmatprep.mubr.f32.mxu0 0.0
    %635 = vmatmul.mubr.f32.gmra.mrb[0].mxu0 %v65
    %v636 = vpop.f32.mrb[0].mxu0
    %v637 = vadd.f32 0.0, %v636
    %v638 = vpop.f32.mrb[0].mxu0
    %639 = vmatprep.mubr.f32.mxu0 0.0
    %640 = vmatmul.mubr.f32.gmra.mrb[0].mxu0 %v66
    %v641 = vpop.f32.mrb[0].mxu0
    %v642 = vadd.f32 0.0, %v641
    %v643 = vpop.f32.mrb[0].mxu0
    %644 = vmatprep.mubr.f32.mxu0 0.0
    %645 = vmatmul.mubr.f32.gmra.mrb[0].mxu0 %v67
    %v646 = vpop.f32.mrb[0].mxu0
    %v647 = vadd.f32 0.0, %v646
    %v648 = vpop.f32.mrb[0].mxu0
    %649 = vmatprep.mubr.f32.mxu0 0.0
    %650 = vmatmul.mubr.f32.gmra.mrb[0].mxu0 %v68
    %v651 = vpop.f32.mrb[0].mxu0
    %v652 = vadd.f32 0.0, %v651
    %v653 = vpop.f32.mrb[0].mxu0
    %654 = vmatprep.mubr.f32.mxu0 0.0
    %655 = vmatmul.mubr.f32.gmra.mrb[0].mxu0 %v69
    %v656 = vpop.f32.mrb[0].mxu0
    %v657 = vadd.f32 0.0, %v656
    %v658 = vpop.f32.mrb[0].mxu0
    %659 = vmatprep.mubr.f32.mxu0 0.0
    %660 = vmatmul.mubr.f32.gmra.mrb[0].mxu0 %v70
    %v661 = vpop.f32.mrb[0].mxu0
    %v662 = vadd.f32 0.0, %v661
    %v663 = vpop.f32.mrb[0].mxu0
    %664 = vmatprep.mubr.f32.mxu0 0.0
    %665 = vmatmul.mubr.f32.gmra.mrb[0].mxu0 %v71
    %v666 = vpop.f32.mrb[0].mxu0
    %v667 = vadd.f32 0.0, %v666
    %v668 = vpop.f32.mrb[0].mxu0
    %669 = vmatprep.mubr.f32.mxu0 0.0
    %670 = vmatmul.mubr.f32.gmra.mrb[0].mxu0 %v72
    %v671 = vpop.f32.mrb[0].mxu0
    %v672 = vadd.f32 0.0, %v671
    %v673 = vpop.f32.mrb[0].mxu0
    %674 = vmatprep.mubr.f32.mxu0 0.0
    %675 = vmatmul.mubr.f32.gmra.mrb[0].mxu0 %v73
    %v676 = vpop.f32.mrb[0].mxu0
    %v677 = vadd.f32 0.0, %v676
    %v678 = vpop.f32.mrb[0].mxu0
    %679 = vmatprep.mubr.f32.mxu0 0.0
    %680 = vmatmul.mubr.f32.gmra.mrb[0].mxu0 %v74
    %v681 = vpop.f32.mrb[0].mxu0
    %v682 = vadd.f32 0.0, %v681
    %v683 = vpop.f32.mrb[0].mxu0
    %684 = vmatprep.mubr.f32.mxu0 0.0
    %685 = vmatmul.mubr.f32.gmra.mrb[0].mxu0 %v75
    %v686 = vpop.f32.mrb[0].mxu0
    %v687 = vadd.f32 0.0, %v686
    %v688 = vpop.f32.mrb[0].mxu0
    %689 = vmatprep.mubr.f32.mxu0 0.0
    %690 = vmatmul.mubr.f32.gmra.mrb[0].mxu0 %v76
    %v691 = vpop.f32.mrb[0].mxu0
    %v692 = vadd.f32 0.0, %v691
    %v693 = vpop.f32.mrb[0].mxu0
    %694 = vmatprep.mubr.f32.mxu0 0.0
    %695 = vmatmul.mubr.f32.gmra.mrb[0].mxu0 %v77
    %v696 = vpop.f32.mrb[0].mxu0
    %v697 = vadd.f32 0.0, %v696
    %v698 = vpop.f32.mrb[0].mxu0
    %699 = vmatprep.mubr.f32.mxu0 0.0
    %700 = vmatmul.mubr.f32.gmra.mrb[0].mxu0 %v78
    %v701 = vpop.f32.mrb[0].mxu0
    %v702 = vadd.f32 0.0, %v701
    %v703 = vpop.f32.mrb[0].mxu0
    %704 = vmatprep.mubr.f32.mxu0 0.0
    %705 = vmatmul.mubr.f32.gmra.mrb[0].mxu0 %v79
    %v706 = vpop.f32.mrb[0].mxu0
    %v707 = vadd.f32 0.0, %v706
    %v708 = vpop.f32.mrb[0].mxu0
    %709 = vmatprep.mubr.f32.mxu0 0.0
    %710 = vmatmul.mubr.f32.gmra.mrb[0].mxu0 %v80
    %v711 = vpop.f32.mrb[0].mxu0
    %v712 = vadd.f32 0.0, %v711
    %v713 = vpop.f32.mrb[0].mxu0
    %714 = vmatprep.mubr.f32.mxu0 0.0
    %715 = vmatmul.mubr.f32.gmra.mrb[0].mxu0 %v81
    %v716 = vpop.f32.mrb[0].mxu0
    %v717 = vadd.f32 0.0, %v716
    %v718 = vpop.f32.mrb[0].mxu0
    %719 = vmatprep.mubr.f32.mxu0 0.0
    %720 = vmatmul.mubr.f32.gmra.mrb[0].mxu0 %v82
    %v721 = vpop.f32.mrb[0].mxu0
    %v722 = vadd.f32 0.0, %v721
    %v723 = vpop.f32.mrb[0].mxu0
    %724 = vmatprep.mubr.f32.mxu0 0.0
    %725 = vmatmul.mubr.f32.gmra.mrb[0].mxu0 %v83
    %v726 = vpop.f32.mrb[0].mxu0
    %v727 = vadd.f32 0.0, %v726
    %v728 = vpop.f32.mrb[0].mxu0
    %729 = vmatprep.mubr.f32.mxu0 0.0
    %730 = vmatmul.mubr.f32.gmra.mrb[0].mxu0 %v84
    %v731 = vpop.f32.mrb[0].mxu0
    %v732 = vadd.f32 0.0, %v731
    %v733 = vpop.f32.mrb[0].mxu0
    %734 = vmatprep.mubr.f32.mxu0 0.0
    %735 = vmatmul.mubr.f32.gmra.mrb[0].mxu0 %v85
    %v736 = vpop.f32.mrb[0].mxu0
    %v737 = vadd.f32 0.0, %v736
    %v738 = vpop.f32.mrb[0].mxu0
    %739 = vmatprep.mubr.f32.mxu0 0.0
    %740 = vmatmul.mubr.f32.gmra.mrb[0].mxu0 %v86
    %v741 = vpop.f32.mrb[0].mxu0
    %v742 = vadd.f32 0.0, %v741
    %v743 = vpop.f32.mrb[0].mxu0
    %744 = vmatprep.mubr.f32.mxu0 0.0
    %745 = vmatmul.mubr.f32.gmra.mrb[0].mxu0 %v87
    %v746 = vpop.f32.mrb[0].mxu0
    %v747 = vadd.f32 0.0, %v746
    %v748 = vpop.f32.mrb[0].mxu0
    %749 = vmatprep.mubr.f32.mxu0 0.0
    %750 = vmatmul.mubr.f32.gmra.mrb[0].mxu0 %v88
    %v751 = vpop.f32.mrb[0].mxu0
    %v752 = vadd.f32 0.0, %v751
    %v753 = vpop.f32.mrb[0].mxu0
    %754 = vmatprep.mubr.f32.mxu0 0.0
    %755 = vmatmul.mubr.f32.gmra.mrb[0].mxu0 %v89
    %v756 = vpop.f32.mrb[0].mxu0
    %v757 = vadd.f32 0.0, %v756
    %v758 = vpop.f32.mrb[0].mxu0
    %759 = vmatprep.mubr.f32.mxu0 0.0
    %760 = vmatmul.mubr.f32.gmra.mrb[0].mxu0 %v90
    %v761 = vpop.f32.mrb[0].mxu0
    %v762 = vadd.f32 0.0, %v761
    %v763 = vpop.f32.mrb[0].mxu0
    %764 = vmatprep.mubr.f32.mxu0 0.0
    %765 = vmatmul.mubr.f32.gmra.mrb[0].mxu0 %v91
    %v766 = vpop.f32.mrb[0].mxu0
    %v767 = vadd.f32 0.0, %v766
    %v768 = vpop.f32.mrb[0].mxu0
    %769 = vmatprep.mubr.f32.mxu0 0.0
    %770 = vmatmul.mubr.f32.gmra.mrb[0].mxu0 %v92
    %v771 = vpop.f32.mrb[0].mxu0
    %v772 = vadd.f32 0.0, %v771
    %v773 = vpop.f32.mrb[0].mxu0
    %774 = vmatprep.mubr.f32.mxu0 0.0
    %775 = vmatmul.mubr.f32.gmra.mrb[0].mxu0 %v93
    %v776 = vpop.f32.mrb[0].mxu0
    %v777 = vadd.f32 0.0, %v776
    %v778 = vpop.f32.mrb[0].mxu0
    %779 = vmatprep.mubr.f32.mxu0 0.0
    %780 = vmatmul.mubr.f32.gmra.mrb[0].mxu0 %v94
    %v781 = vpop.f32.mrb[0].mxu0
    %v782 = vadd.f32 0.0, %v781
    %v783 = vpop.f32.mrb[0].mxu0
    %784 = vmatprep.mubr.f32.mxu0 0.0
    %785 = vmatmul.mubr.f32.gmra.mrb[0].mxu0 %v95
    %v786 = vpop.f32.mrb[0].mxu0
    %v787 = vadd.f32 0.0, %v786
    %v788 = vpop.f32.mrb[0].mxu0
    %789 = vmatprep.mubr.f32.mxu0 0.0
    %790 = vmatmul.mubr.f32.gmra.mrb[0].mxu0 %v96
    %v791 = vpop.f32.mrb[0].mxu0
    %v792 = vadd.f32 0.0, %v791
    %v793 = vpop.f32.mrb[0].mxu0
    %794 = vmatprep.mubr.f32.mxu0 0.0
    %795 = vmatmul.mubr.f32.gmra.mrb[0].mxu0 %v97
    %v796 = vpop.f32.mrb[0].mxu0
    %v797 = vadd.f32 0.0, %v796
    %v798 = vpop.f32.mrb[0].mxu0
    %799 = vmatprep.mubr.f32.mxu0 0.0
    %800 = vmatmul.mubr.f32.gmra.mrb[0].mxu0 %v98
    %v801 = vpop.f32.mrb[0].mxu0
    %v802 = vadd.f32 0.0, %v801
    %v803 = vpop.f32.mrb[0].mxu0
    %804 = vmatprep.mubr.f32.mxu0 0.0
    %805 = vmatmul.mubr.f32.gmra.mrb[0].mxu0 %v99
    %v806 = vpop.f32.mrb[0].mxu0
    %v807 = vadd.f32 0.0, %v806
    %v808 = vpop.f32.mrb[0].mxu0
    %809 = vmatprep.mubr.f32.mxu0 0.0
    %810 = vmatmul.mubr.f32.gmra.mrb[0].mxu0 %v100
    %v811 = vpop.f32.mrb[0].mxu0
    %v812 = vadd.f32 0.0, %v811
    %v813 = vpop.f32.mrb[0].mxu0
    %814 = vmatprep.mubr.f32.mxu0 0.0
    %815 = vmatmul.mubr.f32.gmra.mrb[0].mxu0 %v101
    %v816 = vpop.f32.mrb[0].mxu0
    %v817 = vadd.f32 0.0, %v816
    %v818 = vpop.f32.mrb[0].mxu0
    %819 = vmatprep.mubr.f32.mxu0 0.0
    %820 = vmatmul.mubr.f32.gmra.mrb[0].mxu0 %v102
    %v821 = vpop.f32.mrb[0].mxu0
    %v822 = vadd.f32 0.0, %v821
    %v823 = vpop.f32.mrb[0].mxu0
    %824 = vmatprep.mubr.f32.mxu0 0.0
    %825 = vmatmul.mubr.f32.gmra.mrb[0].mxu0 %v103
    %v826 = vpop.f32.mrb[0].mxu0
    %v827 = vadd.f32 0.0, %v826
    %v828 = vpop.f32.mrb[0].mxu0
    %829 = vmatprep.mubr.f32.mxu0 0.0
    %830 = vmatmul.mubr.f32.gmra.mrb[0].mxu0 %v104
    %v831 = vpop.f32.mrb[0].mxu0
    %v832 = vadd.f32 0.0, %v831
    %v833 = vpop.f32.mrb[0].mxu0
    %834 = vmatprep.mubr.f32.mxu0 0.0
    %835 = vmatmul.mubr.f32.gmra.mrb[0].mxu0 %v105
    %v836 = vpop.f32.mrb[0].mxu0
    %v837 = vadd.f32 0.0, %v836
    %v838 = vpop.f32.mrb[0].mxu0
    %839 = vmatprep.mubr.f32.mxu0 0.0
    %840 = vmatmul.mubr.f32.gmra.mrb[0].mxu0 %v106
    %v841 = vpop.f32.mrb[0].mxu0
    %v842 = vadd.f32 0.0, %v841
    %v843 = vpop.f32.mrb[0].mxu0
    %844 = vdwg.mxu0
    %v845 = vmul.f32 %v607, 0.5
    %v846 = vmul.f32 %v612, 0.5
    %v847 = vmul.f32 %v617, 0.5
    %v848 = vmul.f32 %v622, 0.5
    %v849 = vmul.f32 %v627, 0.5
    %v850 = vmul.f32 %v632, 0.5
    %v851 = vmul.f32 %v637, 0.5
    %v852 = vmul.f32 %v642, 0.5
    %v853 = vmul.f32 %v647, 0.5
    %v854 = vmul.f32 %v652, 0.5
    %v855 = vmul.f32 %v657, 0.5
    %v856 = vmul.f32 %v662, 0.5
    %v857 = vmul.f32 %v667, 0.5
    %v858 = vmul.f32 %v672, 0.5
    %v859 = vmul.f32 %v677, 0.5
    %v860 = vmul.f32 %v682, 0.5
    %v861 = vmul.f32 %v687, 0.5
    %v862 = vmul.f32 %v692, 0.5
    %v863 = vmul.f32 %v697, 0.5
    %v864 = vmul.f32 %v702, 0.5
    %v865 = vmul.f32 %v707, 0.5
    %v866 = vmul.f32 %v712, 0.5
    %v867 = vmul.f32 %v717, 0.5
    %v868 = vmul.f32 %v722, 0.5
    %v869 = vmul.f32 %v727, 0.5
    %v870 = vmul.f32 %v732, 0.5
    %v871 = vmul.f32 %v737, 0.5
    %v872 = vmul.f32 %v742, 0.5
    %v873 = vmul.f32 %v747, 0.5
    %v874 = vmul.f32 %v752, 0.5
    %v875 = vmul.f32 %v757, 0.5
    %v876 = vmul.f32 %v762, 0.5
    %v877 = vmul.f32 %v767, 0.5
    %v878 = vmul.f32 %v772, 0.5
    %v879 = vmul.f32 %v777, 0.5
    %v880 = vmul.f32 %v782, 0.5
    %v881 = vmul.f32 %v787, 0.5
    %v882 = vmul.f32 %v792, 0.5
    %v883 = vmul.f32 %v797, 0.5
    %v884 = vmul.f32 %v802, 0.5
    %v885 = vmul.f32 %v807, 0.5
    %v886 = vmul.f32 %v812, 0.5
    %v887 = vmul.f32 %v817, 0.5
    %v888 = vmul.f32 %v822, 0.5
    %v889 = vmul.f32 %v827, 0.5
    %v890 = vmul.f32 %v832, 0.5
    %v891 = vmul.f32 %v837, 0.5
    %v892 = vmul.f32 %v842, 0.5
    %893 = vst [vmem:[#allocation9] sm:$0xff] %v845
    %894 = vst [vmem:[#allocation9 + $0x8] sm:$0xff] %v846
    %895 = vst [vmem:[#allocation9 + $0x10] sm:$0xff] %v847
    %896 = vst [vmem:[#allocation9 + $0x18] sm:$0xff] %v848
    %897 = vst [vmem:[#allocation9 + $0x20] sm:$0xff] %v849
    %898 = vst [vmem:[#allocation9 + $0x28] sm:$0xff] %v850
    %899 = vst [vmem:[#allocation9 + $0x30] sm:$0xff] %v851
    %900 = vst [vmem:[#allocation9 + $0x38] sm:$0xff] %v852
    %901 = vst [vmem:[#allocation9 + $0x40] sm:$0xff] %v853
    %902 = vst [vmem:[#allocation9 + $0x48] sm:$0xff] %v854
    %903 = vst [vmem:[#allocation9 + $0x50] sm:$0xff] %v855
    %904 = vst [vmem:[#allocation9 + $0x58] sm:$0xff] %v856
    %905 = vst [vmem:[#allocation9 + $0x60] sm:$0xff] %v857
    %906 = vst [vmem:[#allocation9 + $0x68] sm:$0xff] %v858
    %907 = vst [vmem:[#allocation9 + $0x70] sm:$0xff] %v859
    %908 = vst [vmem:[#allocation9 + $0x78] sm:$0xff] %v860
    %909 = vst [vmem:[#allocation9 + $0x80] sm:$0xff] %v861
    %910 = vst [vmem:[#allocation9 + $0x88] sm:$0xff] %v862
    %911 = vst [vmem:[#allocation9 + $0x90] sm:$0xff] %v863
    %912 = vst [vmem:[#allocation9 + $0x98] sm:$0xff] %v864
    %913 = vst [vmem:[#allocation9 + $0xa0] sm:$0xff] %v865
    %914 = vst [vmem:[#allocation9 + $0xa8] sm:$0xff] %v866
    %915 = vst [vmem:[#allocation9 + $0xb0] sm:$0xff] %v867
    %916 = vst [vmem:[#allocation9 + $0xb8] sm:$0xff] %v868
    %917 = vst [vmem:[#allocation9 + $0xc0] sm:$0xff] %v869
    %918 = vst [vmem:[#allocation9 + $0xc8] sm:$0xff] %v870
    %919 = vst [vmem:[#allocation9 + $0xd0] sm:$0xff] %v871
    %920 = vst [vmem:[#allocation9 + $0xd8] sm:$0xff] %v872
    %921 = vst [vmem:[#allocation9 + $0xe0] sm:$0xff] %v873
    %922 = vst [vmem:[#allocation9 + $0xe8] sm:$0xff] %v874
    %923 = vst [vmem:[#allocation9 + $0xf0] sm:$0xff] %v875
    %924 = vst [vmem:[#allocation9 + $0xf8] sm:$0xff] %v876
    %925 = vst [vmem:[#allocation9 + $0x100] sm:$0xff] %v877
    %926 = vst [vmem:[#allocation9 + $0x108] sm:$0xff] %v878
    %927 = vst [vmem:[#allocation9 + $0x110] sm:$0xff] %v879
    %928 = vst [vmem:[#allocation9 + $0x118] sm:$0xff] %v880
    %929 = vst [vmem:[#allocation9 + $0x120] sm:$0xff] %v881
    %930 = vst [vmem:[#allocation9 + $0x128] sm:$0xff] %v882
    %931 = vst [vmem:[#allocation9 + $0x130] sm:$0xff] %v883
    %932 = vst [vmem:[#allocation9 + $0x138] sm:$0xff] %v884
    %933 = vst [vmem:[#allocation9 + $0x140] sm:$0xff] %v885
    %934 = vst [vmem:[#allocation9 + $0x148] sm:$0xff] %v886
    %935 = vst [vmem:[#allocation9 + $0x150] sm:$0xff] %v887
    %936 = vst [vmem:[#allocation9 + $0x158] sm:$0xff] %v888
    %937 = vst [vmem:[#allocation9 + $0x160] sm:$0xff] %v889
    %938 = vst [vmem:[#allocation9 + $0x168] sm:$0xff] %v890
    %939 = vst [vmem:[#allocation9 + $0x170] sm:$0xff] %v891
    %940 = vst [vmem:[#allocation9 + $0x178] sm:$0xff] %v892
    // Predicated region
    $region26: #{tpu_custom_call.1} parent=1 // pred_check
      _
    $region27: #{tpu_custom_call.1} parent=1 // pred_check_branch
      %942 = sbr.rel (0) target = $region29
    $region28: #{tpu_custom_call.1} parent=1 // pred_region
      %s944 = ssub.s32 6144, 6144
      %945 = vsyncadd [#allocation4], %s944
      %s946 = sshll.u32 [#allocation8], 4
      %s947 = int_to_ptr.vmem [resolvable:$true] %s946
      %952 = dma.vmem_to_hbm [thread:$0]  %s947, 6144, %s3, [#allocation4], 128, 128, 8
    $region29: #{tpu_custom_call.1} parent=1 // pred_fallthru
      _
    // Predicated region
    $region30: #{tpu_custom_call.1} parent=1 // pred_check
      _
    $region31: #{tpu_custom_call.1} parent=1 // pred_check_branch
      %954 = sbr.rel (0) target = $region33
    $region32: #{tpu_custom_call.1} parent=1 // pred_region
      %s956 = ssub.s32 6144, 6144
      %957 = vsyncadd [#allocation10], %s956
      %s958 = sshll.u32 [#allocation9], 4
      %s959 = int_to_ptr.vmem [resolvable:$true] %s958
      %964 = dma.vmem_to_hbm [thread:$0]  %s959, 6144, %s4, [#allocation10], 128, 128, 8
    $region33: #{tpu_custom_call.1} parent=1 // pred_fallthru
      _
    // Predicated region
    $region34: #{tpu_custom_call.1} parent=1 // pred_check
      _
    $region35: #{tpu_custom_call.1} parent=1 // pred_check_branch
      %966 = sbr.rel (0) target = $region37
    $region36: #{tpu_custom_call.1} parent=1 // pred_region
      %967 = dma.done [#allocation4], 6144
    $region37: #{tpu_custom_call.1} parent=1 // pred_fallthru
      _
    // Predicated region
    $region38: #{tpu_custom_call.1} parent=1 // pred_check
      _
    $region39: #{tpu_custom_call.1} parent=1 // pred_check_branch
      %969 = sbr.rel (0) target = $region41
    $region40: #{tpu_custom_call.1} parent=1 // pred_region
      %970 = dma.done [#allocation10], 6144
    $region41: #{tpu_custom_call.1} parent=1 // pred_fallthru
      _
    %971 = vsyncpa [#allocation3], 1
    %972 = vsyncpa [#allocation6], 1
    %973 = vsyncpa [#allocation4], 1
    %974 = vsyncpa [#allocation10], 1

</llo_original>
